<compile_context>
chip_gen: v6e
topology: v6e:2x2x1
jax: 0.10.0
libtpu: 0.0.40
codegen_flags: <defaults>
</compile_context>

<pallas_src>
import functools
import math

import jax
import jax.numpy as jnp
from jax.experimental import pallas as pl
from jax.experimental.pallas import tpu as pltpu


# -----------------------------------------------------------------------------
# Pallas kernel: out = residual + per_sample_scale * branch   (single HBM pass)
# -----------------------------------------------------------------------------
def _residual_drop_path_kernel(scale_ref, branch_ref, res_ref, o_ref):
    # scale_ref : VMEM (Bt, 1)  per-sample scale = mask_b / keep_prob (1.0 in eval)
    # branch_ref, res_ref, o_ref : VMEM (Bt, T) lane-dense tiles of (B, N*C) slabs
    o_ref[...] = res_ref[...] + branch_ref[...] * scale_ref[...]


def _vmem_plan():
    """(per-tile byte budget, vmem_limit_bytes) tuned per TPU generation."""
    kind = ""
    try:
        kind = jax.devices()[0].device_kind.lower()
    except Exception:
        pass
    if ("v5" in kind) or ("v6" in kind):
        # 128 MiB physical VMEM: bigger tiles, raise the scoped limit.
        return 6 << 20, 64 * 1024 * 1024
    # v7x (64 MiB VMEM) and unknown chips: conservative tile, default scoped limit.
    return 2 << 20, None


_LANE_TILE = 32768  # feature-tile cap (multiple of 128 -> unmasked, lane-dense stores)


def _pick_tiles(B, F, itemsize):
    """Pick (Bt, T, vmem_limit) for the flattened (B, F) layout.

    - T (lane dim): full F, or a large multiple of 128.
    - Bt (sublane dim): as many samples per grid step as the per-tile VMEM budget
      allows (3 streams x 2 pipeline buffers resident), amortizing the ~0.35 us
      per-grid-step overhead; kept 8-aligned (or == B) for the (8,128) rule.
    """
    tile_budget, vmem_limit = _vmem_plan()
    if F % 128 == 0:
        T = min(F, _LANE_TILE)
    else:
        T = F  # last block dim must be a multiple of 128 or the full extent
    rows = max(int(tile_budget // max(T * itemsize, 1)), 1)
    if rows >= B or B <= 8:
        Bt = B
    else:
        Bt = min(max((rows // 8) * 8, 8), B)
    # v7x megacore: prefer >=2 grid steps when the batch is big enough to split.
    if Bt == B and B >= 16 and pl.cdiv(F, T) == 1:
        Bt = max(((B // 2) // 8) * 8, 8)
    return Bt, T, vmem_limit


def _fused_residual_drop_path_2d(scale, branch2d, res2d, Bt, T, vmem_limit):
    B, F = branch2d.shape
    grid = (pl.cdiv(B, Bt), pl.cdiv(F, T))
    return pl.pallas_call(
        _residual_drop_path_kernel,
        out_shape=jax.ShapeDtypeStruct((B, F), res2d.dtype),
        grid=grid,
        in_specs=[
            pl.BlockSpec((Bt, 1), lambda i, j: (i, 0)),   # per-sample scale
            pl.BlockSpec((Bt, T), lambda i, j: (i, j)),   # branch (attn / mlp output)
            pl.BlockSpec((Bt, T), lambda i, j: (i, j)),   # residual
        ],
        out_specs=pl.BlockSpec((Bt, T), lambda i, j: (i, j)),
        input_output_aliases={2: 0},  # update the residual in place (no extra HBM buffer)
        compiler_params=pltpu.CompilerParams(
            dimension_semantics=("parallel", "parallel"),
            vmem_limit_bytes=vmem_limit,
        ),
    )(scale, branch2d, res2d)


def _drop_path_scale(B, drop_prob, training, key, dtype):
    """Per-sample scale = floor(keep_prob + U[0,1)) / keep_prob (torch semantics).

    Mask math is done in float32; only the final scale is cast to `dtype`.
    """
    if (not training) or drop_prob == 0.0:
        return jnp.ones((B, 1), dtype=dtype)
    if key is None:
        raise ValueError("drop_path: a PRNG key is required in training mode.")
    keep_prob = 1.0 - float(drop_prob)
    rand = keep_prob + jax.random.uniform(key, (B,), dtype=jnp.float32)
    mask = jnp.floor(rand)
    return (mask / keep_prob).astype(dtype).reshape(B, 1)


def residual_drop_path_add(residual, branch, drop_prob=0.0, training=False, *, key=None):
    """Fused `residual + drop_path(branch)` — one read + one write pass over HBM."""
    B = residual.shape[0]
    F = math.prod(residual.shape[1:])
    scale = _drop_path_scale(B, drop_prob, training, key, residual.dtype)
    res2d = residual.reshape(B, F)
    br2d = branch.astype(residual.dtype).reshape(B, F)
    Bt, T, vmem_limit = _pick_tiles(B, F, residual.dtype.itemsize)
    out2d = _fused_residual_drop_path_2d(scale, br2d, res2d, Bt, T, vmem_limit)
    return out2d.reshape(residual.shape)


# -----------------------------------------------------------------------------
# Plain-JAX pieces of the Block (XLA handles these well; not the review target)
# -----------------------------------------------------------------------------
def _layer_norm(x, w, b, eps=1e-5):
    mu = jnp.mean(x, axis=-1, keepdims=True)
    var = jnp.mean(jnp.square(x - mu), axis=-1, keepdims=True)
    return (x - mu) * jax.lax.rsqrt(var + eps) * w + b


def _attention(p, x, num_heads, qk_scale=None):
    B, N, C = x.shape
    head_dim = C // num_heads
    scale = qk_scale if qk_scale is not None else head_dim ** (-0.5)
    qkv = x @ p["qkv_w"] + p["qkv_b"]                      # (B, N, 3C)
    qkv = qkv.reshape(B, N, 3, num_heads, head_dim)
    qkv = jnp.transpose(qkv, (2, 0, 3, 1, 4))              # (3, B, H, N, hd)
    q, k, v = qkv[0], qkv[1], qkv[2]
    attn = jnp.einsum("bhqd,bhkd->bhqk", q, k) * scale
    attn = jax.nn.softmax(attn, axis=-1)
    out = jnp.einsum("bhqk,bhkd->bhqd", attn, v)
    out = jnp.transpose(out, (0, 2, 1, 3)).reshape(B, N, C)
    return out @ p["proj_w"] + p["proj_b"]


def _mlp(p, x):
    h = jax.nn.gelu(x @ p["fc1_w"] + p["fc1_b"], approximate=False)  # torch nn.GELU (erf)
    return h @ p["fc2_w"] + p["fc2_b"]


def init_block_params(key, dim, mlp_ratio=4.0):
    hidden = int(dim * mlp_ratio)
    ks = jax.random.split(key, 4)

    def w(k, shape):
        return jax.random.normal(k, shape, jnp.float32) * 0.02

    return {
        "norm1_w": jnp.ones((dim,), jnp.float32),
        "norm1_b": jnp.zeros((dim,), jnp.float32),
        "qkv_w": w(ks[0], (dim, 3 * dim)),
        "qkv_b": jnp.zeros((3 * dim,), jnp.float32),  # qkv_bias=False -> zero bias
        "proj_w": w(ks[1], (dim, dim)),
        "proj_b": jnp.zeros((dim,), jnp.float32),
        "norm2_w": jnp.ones((dim,), jnp.float32),
        "norm2_b": jnp.zeros((dim,), jnp.float32),
        "fc1_w": w(ks[2], (dim, hidden)),
        "fc1_b": jnp.zeros((hidden,), jnp.float32),
        "fc2_w": w(ks[3], (hidden, dim)),
        "fc2_b": jnp.zeros((dim,), jnp.float32),
    }


@functools.partial(
    jax.jit,
    static_argnames=("num_heads", "qk_scale", "drop_path_prob", "training"),
)
def _block_forward(params, x, dp_key, *, num_heads, qk_scale, drop_path_prob, training):
    k1, k2 = jax.random.split(dp_key)
    h = _attention(params, _layer_norm(x, params["norm1_w"], params["norm1_b"]),
                   num_heads, qk_scale)
    x = residual_drop_path_add(x, h, drop_path_prob, training, key=k1)   # fused Pallas
    h = _mlp(params, _layer_norm(x, params["norm2_w"], params["norm2_b"]))
    x = residual_drop_path_add(x, h, drop_path_prob, training, key=k2)   # fused Pallas
    return x


class Block:
    """JAX/Pallas port of the PyTorch ViT Block.

    x = x + drop_path(attn(norm1(x)));  x = x + drop_path(mlp(norm2(x)))
    Each DropPath + residual-add runs as a single fused Pallas kernel.
    """

    def __init__(self, dim, num_heads, mlp_ratio=4.0, qkv_bias=False, qk_scale=None,
                 drop=0.0, attn_drop=0.0, drop_path=0.0, *, key):
        if drop != 0.0 or attn_drop != 0.0:
            # TODO(synk): thread PRNG keys for proj/attn dropout; Block defaults are 0.0.
            raise NotImplementedError("non-zero drop/attn_drop rates are not implemented")
        del qkv_bias  # bias tensors are kept but zero-initialized (equivalent to no bias)
        self.num_heads = num_heads
        self.qk_scale = qk_scale
        self.drop_path_prob = float(drop_path)
        self.params = init_block_params(key, dim, mlp_ratio)
        self.training = True  # mimic nn.Module default mode

    def __call__(self, x, key=None):
        if self.training and self.drop_path_prob > 0.0 and key is None:
            raise ValueError("Block: a PRNG key is required when training with drop_path > 0.")
        dp_key = key if key is not None else jax.random.PRNGKey(0)  # unused in eval mode
        return _block_forward(
            self.params, x, dp_key,
            num_heads=self.num_heads, qk_scale=self.qk_scale,
            drop_path_prob=self.drop_path_prob, training=self.training,
        )


if __name__ == "__main__":
    root = jax.random.PRNGKey(0)
    k_param, k_x, k_dp = jax.random.split(root, 3)

    B, N, C = 2, 8, 32          # small ViT-style token tensor (batch, tokens, dim)
    num_heads = 4
    dpp = 0.25

    blk = Block(dim=C, num_heads=num_heads, mlp_ratio=4.0, drop_path=dpp, key=k_param)
    x = jax.random.normal(k_x, (B, N, C), dtype=jnp.float32)

    # ---- training mode (stochastic depth active) ----
    blk.training = True
    y = jax.block_until_ready(blk(x, key=k_dp))

    # pure-JAX reference with identical parameters and mask construction
    def ref_forward(x_in, training):
        p = blk.params
        k1, k2 = jax.random.split(k_dp)

        def scale(k):
            if not training:
                return jnp.ones((B, 1, 1), x_in.dtype)
            keep = 1.0 - dpp
            r = keep + jax.random.uniform(k, (B,), dtype=jnp.float32)
            return (jnp.floor(r) / keep).astype(x_in.dtype).reshape(B, 1, 1)

        h = _attention(p, _layer_norm(x_in, p["norm1_w"], p["norm1_b"]), num_heads, None)
        x1 = x_in + h * scale(k1)
        h = _mlp(p, _layer_norm(x1, p["norm2_w"], p["norm2_b"]))
        return x1 + h * scale(k2)

    y_ref = ref_forward(x, training=True)
    assert jnp.allclose(y, y_ref, atol=1e-5, rtol=1e-5), "training-mode mismatch vs reference"

    # ---- eval mode (DropPath is identity) ----
    blk.training = False
    y_eval = jax.block_until_ready(blk(x))
    y_eval_ref = ref_forward(x, training=False)
    assert jnp.allclose(y_eval, y_eval_ref, atol=1e-5, rtol=1e-5), "eval-mode mismatch vs reference"

    print("KERNEL_OK")
</pallas_src>

<mosaic_0001>
module attributes {stable_mosaic.version = 11 : i64} {
  func.func @_residual_drop_path_kernel(%arg0: i32, %arg1: i32, %arg2: memref<2x1xf32, #tpu.memory_space<vmem>>, %arg3: memref<2x256xf32, #tpu.memory_space<vmem>>, %arg4: memref<2x256xf32, #tpu.memory_space<vmem>>, %arg5: memref<2x256xf32, #tpu.memory_space<vmem>>) attributes {dimension_semantics = [#tpu.dimension_semantics<parallel>, #tpu.dimension_semantics<parallel>], iteration_bounds = array<i64: 1, 1>, scalar_prefetch = 0 : i64, scratch_operands = 0 : i64, tpu.core_type = #tpu.core_type<tc>, window_params = [{transform_indices = @transform_0, window_bounds = array<i64: 2, 1>}, {transform_indices = @transform_1, window_bounds = array<i64: 2, 256>}, {transform_indices = @transform_2, window_bounds = array<i64: 2, 256>}, {transform_indices = @transform_3, window_bounds = array<i64: 2, 256>}]} {
    %c0 = arith.constant 0 : index
    %c0_0 = arith.constant 0 : index
    %0 = vector.load %arg4[%c0, %c0_0] : memref<2x256xf32, #tpu.memory_space<vmem>>, vector<2x256xf32>
    %c0_1 = arith.constant 0 : index
    %c0_2 = arith.constant 0 : index
    %1 = vector.load %arg3[%c0_1, %c0_2] : memref<2x256xf32, #tpu.memory_space<vmem>>, vector<2x256xf32>
    %c0_3 = arith.constant 0 : index
    %c0_4 = arith.constant 0 : index
    %2 = vector.load %arg2[%c0_3, %c0_4] : memref<2x1xf32, #tpu.memory_space<vmem>>, vector<2x1xf32>
    %3 = vector.broadcast %2 : vector<2x1xf32> to vector<2x256xf32>
    %4 = arith.mulf %1, %3 : vector<2x256xf32>
    %5 = arith.addf %0, %4 : vector<2x256xf32>
    %c0_5 = arith.constant 0 : index
    %c0_6 = arith.constant 0 : index
    %6 = vector.load %arg5[%c0_5, %c0_6] : memref<2x256xf32, #tpu.memory_space<vmem>>, vector<2x256xf32>
    tpu.vector_store %arg5[%c0_5, %c0_6], %5 {strides = array<i32>} : memref<2x256xf32, #tpu.memory_space<vmem>>, vector<2x256xf32>,
    return
  }
  func.func @transform_0(%arg0: i32, %arg1: i32) -> (i32, i32) {
    %c0_i32 = arith.constant 0 : i32
    %c0_i32_0 = arith.constant 0 : i32
    return %arg0, %c0_i32 : i32, i32
  }
  func.func @transform_1(%arg0: i32, %arg1: i32) -> (i32, i32) {
    %c0_i32 = arith.constant 0 : i32
    return %arg0, %arg1 : i32, i32
  }
  func.func @transform_2(%arg0: i32, %arg1: i32) -> (i32, i32) {
    %c0_i32 = arith.constant 0 : i32
    return %arg0, %arg1 : i32, i32
  }
  func.func @transform_3(%arg0: i32, %arg1: i32) -> (i32, i32) {
    %c0_i32 = arith.constant 0 : i32
    return %arg0, %arg1 : i32, i32
  }
}

</mosaic_0001>

<llo_original>
// kernel: _block_forward.16
$region0: #{_block_forward.16}
  #allocation0 [shape = 'u32[]', space=smem, size = 0x4, offset = 0x4, fixed_abs, tag = 'smem constant byte address 0x4 - core index']
  #allocation1 [shape = 'u32[144,128]{1,0:T(1,128)}', space=vmem, size = 0x12000, scoped, tag = 'internal scratch']
  %s0 = inlined_call_operand.vmem [shape: f32[2,1], index: 0, kind: input, shape index: {}]
  %s1 = inlined_call_operand.vmem [shape: f32[2,256], index: 1, kind: input, shape index: {}]
  %s2 = inlined_call_operand.vmem [shape: f32[2,256], index: 2, kind: input, shape index: {}, may-alias: {2,3}]
  %s3 = inlined_call_operand.vmem [shape: f32[2,256], index: 3, kind: output, shape index: {}, may-alias: {2,3}]
  %s4 = sld [smem:[#allocation0]]
  $region22: #{_block_forward.16} parent=0
    _
  %s6 = ssub.s32 1, %s4
  %s7 = scalar_select 0, %s6, %s4
  // Predicated region
  $region2: #{_block_forward.16} parent=0 // pred_check
    _
  $region3: #{_block_forward.16} parent=0 // pred_check_branch
    %9 = sbr.rel (0) target = $region5
  $region4: #{_block_forward.16} parent=0 // pred_region
    _
  $region5: #{_block_forward.16} parent=0 // pred_fallthru
    _
  // Predicated region
  $region6: #{_block_forward.16} parent=0 // pred_check
    _
  $region7: #{_block_forward.16} parent=0 // pred_check_branch
    %11 = sbr.rel (0) target = $region9
  $region8: #{_block_forward.16} parent=0 // pred_region
    _
  $region9: #{_block_forward.16} parent=0 // pred_fallthru
    _
  // Predicated region
  $region10: #{_block_forward.16} parent=0 // pred_check
    _
  $region11: #{_block_forward.16} parent=0 // pred_check_branch
    %13 = sbr.rel (0) target = $region13
  $region12: #{_block_forward.16} parent=0 // pred_region
    _
  $region13: #{_block_forward.16} parent=0 // pred_fallthru
    _
  %v14 = vld [vmem:[%s2] sm:$0xf]
  %v15 = vld [vmem:[%s1] sm:$0xf]
  %v16 = vld [vmem:[%s0] sm:$0x3]
  %18 = vset.pattern.permute.xlu0 0
  %19 = vperm.xlu0 %18, %v16
  %v20 = vpop.permute.xlu0 %19
  %v22 = vunpack.c.l.s4 269488144
  %v23 = vunpack.c.0.s8 %v22
  %v24 = vlaneseq
  %v25 = vshrl.u32 %v24, 7
  %v26 = vsub.s32 %v23, %v25
  %v27 = vrot.slane %v20, %v26
  %v29 = vmul.f32 %v15, %v27
  %v30 = vadd.f32 %v14, %v29
  %31 = vst [vmem:[%s3] sm:$0xf] %v30
  // Predicated region
  $region14: #{_block_forward.16} parent=0 // pred_check
    _
  $region15: #{_block_forward.16} parent=0 // pred_check_branch
    %33 = sbr.rel (0) target = $region17
  $region16: #{_block_forward.16} parent=0 // pred_region
    _
  $region17: #{_block_forward.16} parent=0 // pred_fallthru
    _
  // Predicated region
  $region18: #{_block_forward.16} parent=0 // pred_check
    _
  $region19: #{_block_forward.16} parent=0 // pred_check_branch
    %35 = sbr.rel (0) target = $region21
  $region20: #{_block_forward.16} parent=0 // pred_region
    _
  $region21: #{_block_forward.16} parent=0 // pred_fallthru
    _

</llo_original>
